<compile_context>
chip_gen: v7x
topology: tpu7x:2x2x1
jax: 0.10.0
libtpu: 0.0.40
codegen_flags: <defaults>
</compile_context>

<pallas_src>
import jax
import jax.numpy as jnp
from jax.experimental import pallas as pl
from jax.experimental.pallas import tpu as pltpu

_SUBLANE = 8   # f32 sublane packing / min tile granularity on the batch dim


def _round_up(x, m):
    return ((x + m - 1) // m) * m


def _default_vmem_budget_bytes():
    """Per-generation VMEM budget for tiling decisions."""
    kind = ""
    try:
        kind = jax.devices()[0].device_kind.lower()
    except Exception:
        pass
    if ("v5" in kind) or ("v6" in kind):
        return 80 * 1024 * 1024   # 128 MiB physical VMEM: big batch tiles -> HBM roofline
    return 40 * 1024 * 1024       # v7x (64 MiB per TensorCore) or unknown: conservative


# --------------------------------------------------------------------------- #
# Kernels
# --------------------------------------------------------------------------- #
def _mlp_kernel_resident(x_ref, w1_ref, b1_ref, w2_ref, b2_ref, o_ref):
    """out = relu(x @ W1 + b1) @ W2 + b2 with W1/W2 fully VMEM-resident."""
    z1 = jnp.dot(x_ref[...], w1_ref[...], preferred_element_type=jnp.float32)
    z1 = z1 + b1_ref[...]                      # f32 VPU math (v5e-safe)
    a1 = jnp.maximum(z1, 0.0)
    out = jnp.dot(a1.astype(w2_ref.dtype), w2_ref[...],
                  preferred_element_type=jnp.float32)
    o_ref[...] = (out + b2_ref[...]).astype(o_ref.dtype)


def _mlp_kernel_hidden_tiled(x_ref, w1_ref, b1_ref, w2_ref, b2_ref, o_ref, acc_ref):
    """Same math, hidden dim tiled over grid axis 1 with an f32 accumulator."""
    h = pl.program_id(1)

    @pl.when(h == 0)
    def _():
        acc_ref[...] = jnp.zeros_like(acc_ref)

    z1 = jnp.dot(x_ref[...], w1_ref[...], preferred_element_type=jnp.float32)
    z1 = z1 + b1_ref[...]
    a1 = jnp.maximum(z1, 0.0)
    acc_ref[...] += jnp.dot(a1.astype(w2_ref.dtype), w2_ref[...],
                            preferred_element_type=jnp.float32)

    @pl.when(h == pl.num_programs(1) - 1)
    def _():
        o_ref[...] = (acc_ref[...] + b2_ref[...]).astype(o_ref.dtype)


# --------------------------------------------------------------------------- #
# One-time parameter preparation (cast / path decision / optional n1 padding)
# --------------------------------------------------------------------------- #
def prepare_params(w1, b1, w2, b2, *, matmul_dtype=jnp.float32,
                   vmem_budget_bytes=None, hidden_tile=None):
    """Cast params to the matmul dtype once, reshape biases to (1, n), decide
    whether the weights stay VMEM-resident or the hidden dim must be tiled,
    and (only in that case) zero-pad n1 to a multiple of the hidden tile
    (exact: padded hidden units have zero weights+bias, relu(0)=0).

    w1: (n0, n1), b1: (n1,), w2: (n1, n2), b2: (n2,)  -- already (in, out).
    On v6e/v7x, matmul_dtype=jnp.bfloat16 is the fast path (f32 accumulation).
    """
    n0, n1 = w1.shape
    n1_w, n2 = w2.shape
    if n1_w != n1 or b1.shape != (n1,) or b2.shape != (n2,):
        raise ValueError("inconsistent parameter shapes")
    if vmem_budget_bytes is None:
        vmem_budget_bytes = _default_vmem_budget_bytes()
    mm_bytes = jnp.dtype(matmul_dtype).itemsize

    resident_bytes = (n0 * n1 + n1 * n2) * mm_bytes + (n1 + n2) * 4
    use_hidden_tiling = (hidden_tile is not None
                         or resident_bytes > vmem_budget_bytes // 3)

    if use_hidden_tiling:
        if hidden_tile is not None:
            th = int(hidden_tile)
        else:
            # Largest power-of-two tile (>=128) whose double-buffered W1/W2
            # tiles stay within ~1/4 of the VMEM budget.
            th = 128
            while (th * 2 < n1 and
                   2 * (n0 + n2) * (th * 2) * mm_bytes <= vmem_budget_bytes // 4):
                th *= 2
        if th % 128 != 0:
            raise ValueError("hidden_tile must be a multiple of 128")
        n1p = _round_up(n1, th)
    else:
        th = 0
        n1p = n1

    w1c = w1.astype(matmul_dtype)
    w2c = w2.astype(matmul_dtype)
    b1c = b1.astype(jnp.float32)
    if n1p != n1:
        w1c = jnp.zeros((n0, n1p), matmul_dtype).at[:, :n1].set(w1c)
        w2c = jnp.zeros((n1p, n2), matmul_dtype).at[:n1, :].set(w2c)
        b1c = jnp.zeros((n1p,), jnp.float32).at[:n1].set(b1c)

    return {
        "mode": "hidden_tiled" if use_hidden_tiling else "resident",
        "w1": w1c,
        "b1": b1c.reshape(1, n1p),
        "w2": w2c,
        "b2": b2.astype(jnp.float32).reshape(1, n2),
        "n0": int(n0), "n1": int(n1p), "n1_true": int(n1), "n2": int(n2),
        "th": int(th),
        "matmul_dtype": jnp.dtype(matmul_dtype),
        "vmem_budget_bytes": int(vmem_budget_bytes),
    }


def _choose_batch_tile(B, n0, n1_tile, n2, mm_bytes, out_bytes, fixed_bytes, budget):
    """Largest batch tile whose working set fits the VMEM budget, capped so
    large B still yields >= ~4 grid steps (v7x megacore + DMA pipeline depth)."""
    chosen = _SUBLANE
    for tb in (4096, 2048, 1024, 512, 256, 128, 64, 32, 16, 8):
        streamed = 2 * tb * (n0 * mm_bytes + n2 * out_bytes)        # x / out, dbl-buffered
        inter = tb * n1_tile * (4 + mm_bytes) + tb * n2 * 4         # z1(f32) + a1 + acc
        if fixed_bytes + streamed + inter <= budget:
            chosen = tb
            break
    cap = max(_SUBLANE, _round_up(pl.cdiv(B, 4), _SUBLANE))
    chosen = min(chosen, cap)
    if chosen >= B:
        return B            # single full-extent batch block (legal for any B)
    return chosen           # multiple of 8; ragged last block is handled by Pallas


# --------------------------------------------------------------------------- #
# Forward pass
# --------------------------------------------------------------------------- #
def simple_nn_forward(x, params):
    """relu(x @ W1 + b1) @ W2 + b2, fused in one pallas_call.  x: (B, n0)."""
    B, n0 = x.shape
    if n0 != params["n0"]:
        raise ValueError("x feature dim does not match parameters")
    n1 = params["n1"]                 # padded to a multiple of th in hidden-tiled mode
    n1_true = params["n1_true"]
    n2 = params["n2"]
    mm_dtype = params["matmul_dtype"]
    mm_bytes = jnp.dtype(mm_dtype).itemsize
    out_dtype = x.dtype
    out_bytes = jnp.dtype(out_dtype).itemsize
    budget = params["vmem_budget_bytes"]
    hidden_tiled = params["mode"] == "hidden_tiled"
    th = params["th"] if hidden_tiled else n1

    xc = x.astype(mm_dtype)

    if hidden_tiled:
        # Only b2 is grid-resident; W1/b1/W2 tiles stream (double-buffered).
        fixed = n2 * 4 + 2 * (n0 * th * mm_bytes + th * 4 + th * n2 * mm_bytes)
    else:
        # Weights + f32 biases resident, single-buffered.
        fixed = (n0 * n1 + n1 * n2) * mm_bytes + (n1 + n2) * 4

    TB = _choose_batch_tile(B, n0, th, n2, mm_bytes, out_bytes, fixed, budget)
    grid_b = pl.cdiv(B, TB)

    # True (unpadded) cost for XLA's scheduler.
    flops = 2 * B * n0 * n1_true + 2 * B * n1_true * n2
    weight_bytes = (n0 * n1 + n1 * n2) * mm_bytes + (n1 + n2) * 4
    weight_reads = grid_b if hidden_tiled else 1
    bytes_accessed = B * n0 * mm_bytes + weight_reads * weight_bytes + B * n2 * out_bytes
    cost = pl.CostEstimate(flops=int(flops), transcendentals=0,
                           bytes_accessed=int(bytes_accessed))

    vmem_limit = min(int(budget) + (8 << 20), 112 * 1024 * 1024)

    def run(single_buffer_resident):
        def resident_spec(shape, index_map):
            # Constant index_map keeps these VMEM-resident across the grid;
            # Buffered(1) drops the useless second pipeline buffer.
            if single_buffer_resident:
                return pl.BlockSpec(shape, index_map, pipeline_mode=pl.Buffered(1))
            return pl.BlockSpec(shape, index_map)

        if hidden_tiled:
            grid = (grid_b, n1 // th)
            in_specs = [
                pl.BlockSpec((TB, n0), lambda i, h: (i, 0)),   # x: per batch tile
                pl.BlockSpec((n0, th), lambda i, h: (0, h)),   # W1 column tile
                pl.BlockSpec((1, th), lambda i, h: (0, h)),    # b1 tile
                pl.BlockSpec((th, n2), lambda i, h: (h, 0)),   # W2 row tile
                resident_spec((1, n2), lambda i, h: (0, 0)),   # b2: resident
            ]
            out_specs = pl.BlockSpec((TB, n2), lambda i, h: (i, 0))
            scratch = [pltpu.VMEM((TB, n2), jnp.float32)]      # f32 accumulator
            kernel = _mlp_kernel_hidden_tiled
            dim_sem = ("parallel", "arbitrary")
        else:
            grid = (grid_b,)
            in_specs = [
                pl.BlockSpec((TB, n0), lambda i: (i, 0)),      # x: streamed per tile
                resident_spec((n0, n1), lambda i: (0, 0)),     # W1: resident
                resident_spec((1, n1), lambda i: (0, 0)),      # b1: resident
                resident_spec((n1, n2), lambda i: (0, 0)),     # W2: resident
                resident_spec((1, n2), lambda i: (0, 0)),      # b2: resident
            ]
            out_specs = pl.BlockSpec((TB, n2), lambda i: (i, 0))
            scratch = []
            kernel = _mlp_kernel_resident
            dim_sem = ("parallel",)

        return pl.pallas_call(
            kernel,
            out_shape=jax.ShapeDtypeStruct((B, n2), out_dtype),
            grid_spec=pltpu.PrefetchScalarGridSpec(
                num_scalar_prefetch=0,
                grid=grid,
                in_specs=in_specs,
                out_specs=out_specs,
                scratch_shapes=scratch,
            ),
            compiler_params=pltpu.CompilerParams(
                dimension_semantics=dim_sem,
                vmem_limit_bytes=vmem_limit,
            ),
            cost_estimate=cost,
        )(xc, params["w1"], params["b1"], params["w2"], params["b2"])

    try:
        return run(True)
    except Exception:
        # pipeline_mode=pl.Buffered(1) unsupported on this jax/libtpu combo;
        # fall back to default double-buffering (correct, just more VMEM).
        return run(False)


def reference_forward(x, w1, b1, w2, b2):
    z1 = x @ w1 + b1
    a1 = jnp.maximum(z1, 0.0)
    return a1 @ w2 + b2


if __name__ == "__main__":
    # Small shapes implied by the module: n0 inputs, n1 hidden, n2 outputs.
    B, n0, n1, n2 = 8, 16, 32, 8

    key = jax.random.PRNGKey(0)
    kx, kw1, kb1, kw2, kb2 = jax.random.split(key, 5)

    x = jax.random.normal(kx, (B, n0), dtype=jnp.float32)

    # PyTorch nn.Linear-style uniform init; weights stored as (in, out).
    bound1 = 1.0 / jnp.sqrt(jnp.float32(n0))
    bound2 = 1.0 / jnp.sqrt(jnp.float32(n1))
    w1 = jax.random.uniform(kw1, (n0, n1), jnp.float32, -bound1, bound1)
    b1 = jax.random.uniform(kb1, (n1,), jnp.float32, -bound1, bound1)
    w2 = jax.random.uniform(kw2, (n1, n2), jnp.float32, -bound2, bound2)
    b2 = jax.random.uniform(kb2, (n2,), jnp.float32, -bound2, bound2)

    ref = reference_forward(x, w1, b1, w2, b2)

    # 1) f32 resident-weights path (tight tolerance vs. reference).
    params_f32 = prepare_params(w1, b1, w2, b2, matmul_dtype=jnp.float32)
    out = jax.block_until_ready(simple_nn_forward(x, params_f32))
    assert out.shape == (B, n2) and out.dtype == x.dtype
    assert jnp.allclose(out, ref, atol=1e-5, rtol=1e-5)

    # 2) bf16 MXU-input path (f32 accumulation) — the v6e/v7x fast path.
    params_bf16 = prepare_params(w1, b1, w2, b2, matmul_dtype=jnp.bfloat16)
    out_bf16 = jax.block_until_ready(simple_nn_forward(x, params_bf16))
    assert out_bf16.shape == (B, n2)
    assert jnp.allclose(out_bf16, ref, atol=5e-2, rtol=5e-2)

    # 3) hidden-tiled fallback path (weights too large for the VMEM budget),
    #    forced here via hidden_tile=128 with a larger hidden dim.
    n1_big = 256
    kw1b, kb1b, kw2b = jax.random.split(jax.random.PRNGKey(1), 3)
    bound2b = 1.0 / jnp.sqrt(jnp.float32(n1_big))
    w1b = jax.random.uniform(kw1b, (n0, n1_big), jnp.float32, -bound1, bound1)
    b1b = jax.random.uniform(kb1b, (n1_big,), jnp.float32, -bound1, bound1)
    w2b = jax.random.uniform(kw2b, (n1_big, n2), jnp.float32, -bound2b, bound2b)
    ref_big = reference_forward(x, w1b, b1b, w2b, b2)
    params_ht = prepare_params(w1b, b1b, w2b, b2, matmul_dtype=jnp.float32,
                               hidden_tile=128)
    out_ht = jax.block_until_ready(simple_nn_forward(x, params_ht))
    assert out_ht.shape == (B, n2)
    assert jnp.allclose(out_ht, ref_big, atol=1e-4, rtol=1e-4)

    print("KERNEL_OK")
</pallas_src>

<mosaic_0001>
module attributes {stable_mosaic.version = 11 : i64} {
  func.func @_mlp_kernel_resident(%arg0: i32, %arg1: memref<8x16xf32, #tpu.memory_space<vmem>>, %arg2: memref<16x32xf32, #tpu.memory_space<vmem>>, %arg3: memref<1x32xf32, #tpu.memory_space<vmem>>, %arg4: memref<32x8xf32, #tpu.memory_space<vmem>>, %arg5: memref<1x8xf32, #tpu.memory_space<vmem>>, %arg6: memref<8x8xf32, #tpu.memory_space<vmem>>) attributes {dimension_semantics = [#tpu.dimension_semantics<parallel>], iteration_bounds = array<i64: 1>, scalar_prefetch = 0 : i64, scratch_operands = 0 : i64, tpu.core_type = #tpu.core_type<tc>, window_params = [{transform_indices = @transform_0, window_bounds = array<i64: 8, 16>}, {pipeline_mode = #tpu.pipeline_mode<synchronous>, transform_indices = @transform_1, window_bounds = array<i64: 16, 32>}, {pipeline_mode = #tpu.pipeline_mode<synchronous>, transform_indices = @transform_2, window_bounds = array<i64: 1, 32>}, {pipeline_mode = #tpu.pipeline_mode<synchronous>, transform_indices = @transform_3, window_bounds = array<i64: 32, 8>}, {pipeline_mode = #tpu.pipeline_mode<synchronous>, transform_indices = @transform_4, window_bounds = array<i64: 1, 8>}, {transform_indices = @transform_5, window_bounds = array<i64: 8, 8>}]} {
    %c0 = arith.constant 0 : index
    %c0_0 = arith.constant 0 : index
    %0 = vector.load %arg1[%c0, %c0_0] : memref<8x16xf32, #tpu.memory_space<vmem>>, vector<8x16xf32>
    %c0_1 = arith.constant 0 : index
    %c0_2 = arith.constant 0 : index
    %1 = vector.load %arg2[%c0_1, %c0_2] : memref<16x32xf32, #tpu.memory_space<vmem>>, vector<16x32xf32>
    %cst = arith.constant dense<0.000000e+00> : vector<8x32xf32>
    %2 = tpu.matmul %0, %1, %cst {dimension_numbers = #tpu.dot_dimension_numbers<[1], [0], [0], [1], [0, 0, 1, 1], [], []>} : vector<8x16xf32>, vector<16x32xf32>, vector<8x32xf32> -> vector<8x32xf32>
    %c0_3 = arith.constant 0 : index
    %c0_4 = arith.constant 0 : index
    %3 = vector.load %arg3[%c0_3, %c0_4] : memref<1x32xf32, #tpu.memory_space<vmem>>, vector<1x32xf32>
    %4 = vector.broadcast %3 : vector<1x32xf32> to vector<8x32xf32>
    %5 = arith.addf %2, %4 : vector<8x32xf32>
    %cst_5 = arith.constant 0.000000e+00 : f32
    %6 = vector.broadcast %cst_5 : f32 to vector<8x32xf32>
    %7 = arith.maximumf %5, %6 : vector<8x32xf32>
    %c0_6 = arith.constant 0 : index
    %c0_7 = arith.constant 0 : index
    %8 = vector.load %arg4[%c0_6, %c0_7] : memref<32x8xf32, #tpu.memory_space<vmem>>, vector<32x8xf32>
    %cst_8 = arith.constant dense<0.000000e+00> : vector<8x8xf32>
    %9 = tpu.matmul %7, %8, %cst_8 {dimension_numbers = #tpu.dot_dimension_numbers<[1], [0], [0], [1], [0, 0, 1, 1], [], []>} : vector<8x32xf32>, vector<32x8xf32>, vector<8x8xf32> -> vector<8x8xf32>
    %c0_9 = arith.constant 0 : index
    %c0_10 = arith.constant 0 : index
    %10 = vector.load %arg5[%c0_9, %c0_10] : memref<1x8xf32, #tpu.memory_space<vmem>>, vector<1x8xf32>
    %11 = vector.broadcast %10 : vector<1x8xf32> to vector<8x8xf32>
    %12 = arith.addf %9, %11 : vector<8x8xf32>
    %c0_11 = arith.constant 0 : index
    %c0_12 = arith.constant 0 : index
    %13 = vector.load %arg6[%c0_11, %c0_12] : memref<8x8xf32, #tpu.memory_space<vmem>>, vector<8x8xf32>
    tpu.vector_store %arg6[%c0_11, %c0_12], %12 {strides = array<i32>} : memref<8x8xf32, #tpu.memory_space<vmem>>, vector<8x8xf32>,
    return
  }
  func.func @transform_0(%arg0: i32) -> (i32, i32) {
    %c0_i32 = arith.constant 0 : i32
    %c0_i32_0 = arith.constant 0 : i32
    return %arg0, %c0_i32 : i32, i32
  }
  func.func @transform_1(%arg0: i32) -> (i32, i32) {
    %c0_i32 = arith.constant 0 : i32
    %c0_i32_0 = arith.constant 0 : i32
    %c0_i32_1 = arith.constant 0 : i32
    return %c0_i32, %c0_i32_0 : i32, i32
  }
  func.func @transform_2(%arg0: i32) -> (i32, i32) {
    %c0_i32 = arith.constant 0 : i32
    %c0_i32_0 = arith.constant 0 : i32
    %c0_i32_1 = arith.constant 0 : i32
    return %c0_i32, %c0_i32_0 : i32, i32
  }
  func.func @transform_3(%arg0: i32) -> (i32, i32) {
    %c0_i32 = arith.constant 0 : i32
    %c0_i32_0 = arith.constant 0 : i32
    %c0_i32_1 = arith.constant 0 : i32
    return %c0_i32, %c0_i32_0 : i32, i32
  }
  func.func @transform_4(%arg0: i32) -> (i32, i32) {
    %c0_i32 = arith.constant 0 : i32
    %c0_i32_0 = arith.constant 0 : i32
    %c0_i32_1 = arith.constant 0 : i32
    return %c0_i32, %c0_i32_0 : i32, i32
  }
  func.func @transform_5(%arg0: i32) -> (i32, i32) {
    %c0_i32 = arith.constant 0 : i32
    %c0_i32_0 = arith.constant 0 : i32
    return %arg0, %c0_i32 : i32, i32
  }
}

module attributes {stable_mosaic.version = 11 : i64} {
  func.func @_mlp_kernel_resident(%arg0: i32, %arg1: memref<8x16xf32, #tpu.memory_space<vmem>>, %arg2: memref<16x32xf32, #tpu.memory_space<vmem>>, %arg3: memref<1x32xf32, #tpu.memory_space<vmem>>, %arg4: memref<32x8xf32, #tpu.memory_space<vmem>>, %arg5: memref<1x8xf32, #tpu.memory_space<vmem>>, %arg6: memref<8x8xf32, #tpu.memory_space<vmem>>) attributes {dimension_semantics = [#tpu.dimension_semantics<parallel>], iteration_bounds = array<i64: 1>, scalar_prefetch = 0 : i64, scratch_operands = 0 : i64, tpu.core_type = #tpu.core_type<tc>, window_params = [{transform_indices = @transform_0, window_bounds = array<i64: 8, 16>}, {pipeline_mode = #tpu.pipeline_mode<synchronous>, transform_indices = @transform_1, window_bounds = array<i64: 16, 32>}, {pipeline_mode = #tpu.pipeline_mode<synchronous>, transform_indices = @transform_2, window_bounds = array<i64: 1, 32>}, {pipeline_mode = #tpu.pipeline_mode<synchronous>, transform_indices = @transform_3, window_bounds = array<i64: 32, 8>}, {pipeline_mode = #tpu.pipeline_mode<synchronous>, transform_indices = @transform_4, window_bounds = array<i64: 1, 8>}, {transform_indices = @transform_5, window_bounds = array<i64: 8, 8>}]} {
    %c0 = arith.constant 0 : index
    %c0_0 = arith.constant 0 : index
    %0 = vector.load %arg1[%c0, %c0_0] : memref<8x16xf32, #tpu.memory_space<vmem>>, vector<8x16xf32>
    %c0_1 = arith.constant 0 : index
    %c0_2 = arith.constant 0 : index
    %1 = vector.load %arg2[%c0_1, %c0_2] : memref<16x32xf32, #tpu.memory_space<vmem>>, vector<16x32xf32>
    %cst = arith.constant dense<0.000000e+00> : vector<8x32xf32>
    %2 = tpu.matmul %0, %1, %cst {dimension_numbers = #tpu.dot_dimension_numbers<[1], [0], [0], [1], [0, 0, 1, 1], [], []>} : vector<8x16xf32>, vector<16x32xf32>, vector<8x32xf32> -> vector<8x32xf32>
    %c0_3 = arith.constant 0 : index
    %c0_4 = arith.constant 0 : index
    %3 = vector.load %arg3[%c0_3, %c0_4] : memref<1x32xf32, #tpu.memory_space<vmem>>, vector<1x32xf32>
    %4 = vector.broadcast %3 : vector<1x32xf32> to vector<8x32xf32>
    %5 = arith.addf %2, %4 : vector<8x32xf32>
    %cst_5 = arith.constant 0.000000e+00 : f32
    %6 = vector.broadcast %cst_5 : f32 to vector<8x32xf32>
    %7 = arith.maximumf %5, %6 : vector<8x32xf32>
    %c0_6 = arith.constant 0 : index
    %c0_7 = arith.constant 0 : index
    %8 = vector.load %arg4[%c0_6, %c0_7] : memref<32x8xf32, #tpu.memory_space<vmem>>, vector<32x8xf32>
    %cst_8 = arith.constant dense<0.000000e+00> : vector<8x8xf32>
    %9 = tpu.matmul %7, %8, %cst_8 {dimension_numbers = #tpu.dot_dimension_numbers<[1], [0], [0], [1], [0, 0, 1, 1], [], []>} : vector<8x32xf32>, vector<32x8xf32>, vector<8x8xf32> -> vector<8x8xf32>
    %c0_9 = arith.constant 0 : index
    %c0_10 = arith.constant 0 : index
    %10 = vector.load %arg5[%c0_9, %c0_10] : memref<1x8xf32, #tpu.memory_space<vmem>>, vector<1x8xf32>
    %11 = vector.broadcast %10 : vector<1x8xf32> to vector<8x8xf32>
    %12 = arith.addf %9, %11 : vector<8x8xf32>
    %c0_11 = arith.constant 0 : index
    %c0_12 = arith.constant 0 : index
    %13 = vector.load %arg6[%c0_11, %c0_12] : memref<8x8xf32, #tpu.memory_space<vmem>>, vector<8x8xf32>
    tpu.vector_store %arg6[%c0_11, %c0_12], %12 {strides = array<i32>} : memref<8x8xf32, #tpu.memory_space<vmem>>, vector<8x8xf32>,
    return
  }
  func.func @transform_0(%arg0: i32) -> (i32, i32) {
    %c0_i32 = arith.constant 0 : i32
    %c0_i32_0 = arith.constant 0 : i32
    return %arg0, %c0_i32 : i32, i32
  }
  func.func @transform_1(%arg0: i32) -> (i32, i32) {
    %c0_i32 = arith.constant 0 : i32
    %c0_i32_0 = arith.constant 0 : i32
    %c0_i32_1 = arith.constant 0 : i32
    return %c0_i32, %c0_i32_0 : i32, i32
  }
  func.func @transform_2(%arg0: i32) -> (i32, i32) {
    %c0_i32 = arith.constant 0 : i32
    %c0_i32_0 = arith.constant 0 : i32
    %c0_i32_1 = arith.constant 0 : i32
    return %c0_i32, %c0_i32_0 : i32, i32
  }
  func.func @transform_3(%arg0: i32) -> (i32, i32) {
    %c0_i32 = arith.constant 0 : i32
    %c0_i32_0 = arith.constant 0 : i32
    %c0_i32_1 = arith.constant 0 : i32
    return %c0_i32, %c0_i32_0 : i32, i32
  }
  func.func @transform_4(%arg0: i32) -> (i32, i32) {
    %c0_i32 = arith.constant 0 : i32
    %c0_i32_0 = arith.constant 0 : i32
    %c0_i32_1 = arith.constant 0 : i32
    return %c0_i32, %c0_i32_0 : i32, i32
  }
  func.func @transform_5(%arg0: i32) -> (i32, i32) {
    %c0_i32 = arith.constant 0 : i32
    %c0_i32_0 = arith.constant 0 : i32
    return %arg0, %c0_i32 : i32, i32
  }
}

</mosaic_0001>

<llo_original>
// kernel: tpu_custom_call.1
$region0: #{tpu_custom_call.1}
  #allocation0 [shape = 'u32[]', space=smem, size = 0x4, offset = 0x4, fixed_abs, tag = 'smem constant byte address 0x4 - core index']
  #allocation1 [shape = 'u32[144,128]{1,0:T(1,128)}', space=vmem, size = 0x12000, scoped, tag = 'internal scratch']
  %s0 = inlined_call_operand.vmem [shape: f32[8,16], index: 0, kind: input, shape index: {}]
  %s1 = inlined_call_operand.vmem [shape: f32[16,32], index: 1, kind: input, shape index: {}]
  %s2 = inlined_call_operand.vmem [shape: f32[1,32], index: 2, kind: input, shape index: {}]
  %s3 = inlined_call_operand.vmem [shape: f32[32,8], index: 3, kind: input, shape index: {}]
  %s4 = inlined_call_operand.vmem [shape: f32[1,8], index: 4, kind: input, shape index: {}]
  %s5 = inlined_call_operand.hbm [shape: f32[8,8], index: 5, kind: output, shape index: {}]
  %s6 = sld [smem:[#allocation0]]
  $region30: #{tpu_custom_call.1} parent=0
    _
  %s8 = ssub.s32 1, %s6
  %s9 = scalar_select 0, %s8, %s6
  $region1: #{tpu_custom_call.1} parent=0
    #allocation2 [shape = 'u8[4096]{0}', space=vmem, size = 0x1000, scoped, tag = 'output window, operand 0, single buffered']
    #allocation3 [shape = 's32[1]{0}', space=sflag, size = 0x4, scoped, tag = 'scoped memory for tpu_custom_call.1']
    %10 = vsyncpa [#allocation3], 0
    // Predicated region
    $region2: #{tpu_custom_call.1} parent=1 // pred_check
      _
    $region3: #{tpu_custom_call.1} parent=1 // pred_check_branch
      %12 = sbr.rel (0) target = $region5
    $region4: #{tpu_custom_call.1} parent=1 // pred_region
      _
    $region5: #{tpu_custom_call.1} parent=1 // pred_fallthru
      _
    // Predicated region
    $region6: #{tpu_custom_call.1} parent=1 // pred_check
      _
    $region7: #{tpu_custom_call.1} parent=1 // pred_check_branch
      %14 = sbr.rel (0) target = $region9
    $region8: #{tpu_custom_call.1} parent=1 // pred_region
      _
    $region9: #{tpu_custom_call.1} parent=1 // pred_fallthru
      _
    // Predicated region
    $region10: #{tpu_custom_call.1} parent=1 // pred_check
      _
    $region11: #{tpu_custom_call.1} parent=1 // pred_check_branch
      %16 = sbr.rel (0) target = $region13
    $region12: #{tpu_custom_call.1} parent=1 // pred_region
      _
    $region13: #{tpu_custom_call.1} parent=1 // pred_fallthru
      _
    // Predicated region
    $region14: #{tpu_custom_call.1} parent=1 // pred_check
      _
    $region15: #{tpu_custom_call.1} parent=1 // pred_check_branch
      %18 = sbr.rel (0) target = $region17
    $region16: #{tpu_custom_call.1} parent=1 // pred_region
      _
    $region17: #{tpu_custom_call.1} parent=1 // pred_fallthru
      _
    // Predicated region
    $region18: #{tpu_custom_call.1} parent=1 // pred_check
      _
    $region19: #{tpu_custom_call.1} parent=1 // pred_check_branch
      %20 = sbr.rel (0) target = $region21
    $region20: #{tpu_custom_call.1} parent=1 // pred_region
      _
    $region21: #{tpu_custom_call.1} parent=1 // pred_fallthru
      _
    %v21 = vld [vmem:[%s0] sm:$0xff]
    %v22 = vld [vmem:[%s1] sm:$0xff]
    %v23 = vld [vmem:[%s1 + $0x8] sm:$0xff]
    %v24 = vld [vmem:[%s2] sm:$0x1]
    %v26 = vlaneseq
    %v27 = vshrl.u32 %v26, 7
    %v28 = vsub.s32 0, %v27
    %v29 = vrot.slane %v24, %v28
    %vm31 = vcmask 130048
    %v33 = vsel %vm31, %v21, 0
    %35 = vmatprep.subr.mxu0 0.0
    %36 = vmatpush1.msra.mxu0 %v22
    %37 = vmatprep.subr.mxu0 0.0
    %38 = vmatpush1.msra.mxu0 %v23
    %39 = vmatprep.subr.mxu0 0.0
    %40 = vmatpush1.msra.mxu0 0.0
    %41 = vmatprep.subr.mxu0 0.0
    %42 = vmatpush1.msra.mxu0 0.0
    %43 = vmatprep.subr.mxu0 0.0
    %44 = vmatpush1.msra.mxu0 0.0
    %45 = vmatprep.subr.mxu0 0.0
    %46 = vmatpush1.msra.mxu0 0.0
    %47 = vmatprep.subr.mxu0 0.0
    %48 = vmatpush1.msra.mxu0 0.0
    %49 = vmatprep.subr.mxu0 0.0
    %50 = vmatpush1.msra.mxu0 0.0
    %51 = vmatprep.subr.mxu0 0.0
    %52 = vmatpush1.msra.mxu0 0.0
    %53 = vmatprep.subr.mxu0 0.0
    %54 = vmatpush1.msra.mxu0 0.0
    %55 = vmatprep.subr.mxu0 0.0
    %56 = vmatpush1.msra.mxu0 0.0
    %57 = vmatprep.subr.mxu0 0.0
    %58 = vmatpush1.msra.mxu0 0.0
    %59 = vmatprep.subr.mxu0 0.0
    %60 = vmatpush1.msra.mxu0 0.0
    %61 = vmatprep.subr.mxu0 0.0
    %62 = vmatpush1.msra.mxu0 0.0
    %63 = vmatprep.subr.mxu0 0.0
    %64 = vmatpush1.msra.mxu0 0.0
    %65 = vmatprep.subr.mxu0 0.0
    %66 = vmatpush1.msra.mxu0 0.0
    %67 = vmatprep.subr.mxu0 0.0
    %68 = vmatpush1.msra.mxu0 0.0
    %69 = vmatprep.subr.mxu0 0.0
    %70 = vmatpush1.msra.mxu0 0.0
    %71 = vmatprep.subr.mxu0 0.0
    %72 = vmatpush1.msra.mxu0 0.0
    %73 = vmatprep.subr.mxu0 0.0
    %74 = vmatpush1.msra.mxu0 0.0
    %75 = vmatprep.subr.mxu0 0.0
    %76 = vmatpush1.msra.mxu0 0.0
    %77 = vmatprep.subr.mxu0 0.0
    %78 = vmatpush1.msra.mxu0 0.0
    %79 = vmatprep.subr.mxu0 0.0
    %80 = vmatpush1.msra.mxu0 0.0
    %81 = vmatprep.subr.mxu0 0.0
    %82 = vmatpush1.msra.mxu0 0.0
    %83 = vmatprep.subr.mxu0 0.0
    %84 = vmatpush1.msra.mxu0 0.0
    %85 = vmatprep.subr.mxu0 0.0
    %86 = vmatpush1.msra.mxu0 0.0
    %87 = vmatprep.subr.mxu0 0.0
    %88 = vmatpush1.msra.mxu0 0.0
    %89 = vmatprep.subr.mxu0 0.0
    %90 = vmatpush1.msra.mxu0 0.0
    %91 = vmatprep.subr.mxu0 0.0
    %92 = vmatpush1.msra.mxu0 0.0
    %93 = vmatprep.subr.mxu0 0.0
    %94 = vmatpush1.msra.mxu0 0.0
    %95 = vmatprep.subr.mxu0 0.0
    %96 = vmatpush1.msra.mxu0 0.0
    %97 = vmatprep.subr.mxu0 0.0
    %98 = vmatpush1.msra.mxu0 0.0
    %99 = vmatprep.mubr.f32.mxu0 0.0
    %100 = vmatmul.mubr.f32.gmra.mrb[0].mxu0 %v33
    %v101 = vpop.f32.mrb[0].mxu0
    %v102 = vadd.f32 %v29, %v101
    %v103 = vpop.f32.mrb[0].mxu0
    %104 = vdwg.mxu0
    %v105 = vmax.f32 %v102, 0.0
    %v106 = vld [vmem:[%s3] sm:$0xff]
    %v107 = vld [vmem:[%s3 + $0x8] sm:$0xff]
    %v108 = vld [vmem:[%s3 + $0x10] sm:$0xff]
    %v109 = vld [vmem:[%s3 + $0x18] sm:$0xff]
    %v110 = vld [vmem:[%s4] sm:$0x1]
    %v112 = vlaneseq
    %v113 = vshrl.u32 %v112, 7
    %v114 = vsub.s32 0, %v113
    %v115 = vrot.slane %v110, %v114
    %vm117 = vcmask 261120
    %v119 = vsel %vm117, %v105, 0
    %121 = vmatprep.subr.mxu0 0.0
    %122 = vmatpush1.msra.mxu0 %v106
    %123 = vmatprep.subr.mxu0 0.0
    %124 = vmatpush1.msra.mxu0 %v107
    %125 = vmatprep.subr.mxu0 0.0
    %126 = vmatpush1.msra.mxu0 %v108
    %127 = vmatprep.subr.mxu0 0.0
    %128 = vmatpush1.msra.mxu0 %v109
    %129 = vmatprep.subr.mxu0 0.0
    %130 = vmatpush1.msra.mxu0 0.0
    %131 = vmatprep.subr.mxu0 0.0
    %132 = vmatpush1.msra.mxu0 0.0
    %133 = vmatprep.subr.mxu0 0.0
    %134 = vmatpush1.msra.mxu0 0.0
    %135 = vmatprep.subr.mxu0 0.0
    %136 = vmatpush1.msra.mxu0 0.0
    %137 = vmatprep.subr.mxu0 0.0
    %138 = vmatpush1.msra.mxu0 0.0
    %139 = vmatprep.subr.mxu0 0.0
    %140 = vmatpush1.msra.mxu0 0.0
    %141 = vmatprep.subr.mxu0 0.0
    %142 = vmatpush1.msra.mxu0 0.0
    %143 = vmatprep.subr.mxu0 0.0
    %144 = vmatpush1.msra.mxu0 0.0
    %145 = vmatprep.subr.mxu0 0.0
    %146 = vmatpush1.msra.mxu0 0.0
    %147 = vmatprep.subr.mxu0 0.0
    %148 = vmatpush1.msra.mxu0 0.0
    %149 = vmatprep.subr.mxu0 0.0
    %150 = vmatpush1.msra.mxu0 0.0
    %151 = vmatprep.subr.mxu0 0.0
    %152 = vmatpush1.msra.mxu0 0.0
    %153 = vmatprep.subr.mxu0 0.0
    %154 = vmatpush1.msra.mxu0 0.0
    %155 = vmatprep.subr.mxu0 0.0
    %156 = vmatpush1.msra.mxu0 0.0
    %157 = vmatprep.subr.mxu0 0.0
    %158 = vmatpush1.msra.mxu0 0.0
    %159 = vmatprep.subr.mxu0 0.0
    %160 = vmatpush1.msra.mxu0 0.0
    %161 = vmatprep.subr.mxu0 0.0
    %162 = vmatpush1.msra.mxu0 0.0
    %163 = vmatprep.subr.mxu0 0.0
    %164 = vmatpush1.msra.mxu0 0.0
    %165 = vmatprep.subr.mxu0 0.0
    %166 = vmatpush1.msra.mxu0 0.0
    %167 = vmatprep.subr.mxu0 0.0
    %168 = vmatpush1.msra.mxu0 0.0
    %169 = vmatprep.subr.mxu0 0.0
    %170 = vmatpush1.msra.mxu0 0.0
    %171 = vmatprep.subr.mxu0 0.0
    %172 = vmatpush1.msra.mxu0 0.0
    %173 = vmatprep.subr.mxu0 0.0
    %174 = vmatpush1.msra.mxu0 0.0
    %175 = vmatprep.subr.mxu0 0.0
    %176 = vmatpush1.msra.mxu0 0.0
    %177 = vmatprep.subr.mxu0 0.0
    %178 = vmatpush1.msra.mxu0 0.0
    %179 = vmatprep.subr.mxu0 0.0
    %180 = vmatpush1.msra.mxu0 0.0
    %181 = vmatprep.subr.mxu0 0.0
    %182 = vmatpush1.msra.mxu0 0.0
    %183 = vmatprep.subr.mxu0 0.0
    %184 = vmatpush1.msra.mxu0 0.0
    %185 = vmatprep.mubr.f32.mxu0 0.0
    %186 = vmatmul.mubr.f32.gmra.mrb[0].mxu0 %v119
    %v187 = vpop.f32.mrb[0].mxu0
    %v188 = vadd.f32 %v115, %v187
    %v189 = vpop.f32.mrb[0].mxu0
    %190 = vdwg.mxu0
    %vm191 = vcmask 64512
    %192 = vst.msk [vmem:[#allocation2] sm:$0xff] %vm191, %v188
    // Predicated region
    $region22: #{tpu_custom_call.1} parent=1 // pred_check
      _
    $region23: #{tpu_custom_call.1} parent=1 // pred_check_branch
      %194 = sbr.rel (0) target = $region25
    $region24: #{tpu_custom_call.1} parent=1 // pred_region
      %s196 = ssub.s32 128, 128
      %197 = vsyncadd [#allocation3], %s196
      %s199 = sshll.u32 [#allocation2], 4
      %s200 = int_to_ptr.vmem [resolvable:$true] %s199
      %202 = dma.vmem_to_hbm [thread:$0]  %s200, 128, %s5, [#allocation3]
    $region25: #{tpu_custom_call.1} parent=1 // pred_fallthru
      _
    // Predicated region
    $region26: #{tpu_custom_call.1} parent=1 // pred_check
      _
    $region27: #{tpu_custom_call.1} parent=1 // pred_check_branch
      %204 = sbr.rel (0) target = $region29
    $region28: #{tpu_custom_call.1} parent=1 // pred_region
      %205 = dma.done [#allocation3], 128
    $region29: #{tpu_custom_call.1} parent=1 // pred_fallthru
      _
    %206 = vsyncpa [#allocation3], 1

// kernel: tpu_custom_call.1
$region0: #{tpu_custom_call.1}
  #allocation0 [shape = 'u32[]', space=smem, size = 0x4, offset = 0x4, fixed_abs, tag = 'smem constant byte address 0x4 - core index']
  #allocation1 [shape = 'u32[144,128]{1,0:T(1,128)}', space=vmem, size = 0x12000, scoped, tag = 'internal scratch']
  %s0 = inlined_call_operand.vmem [shape: f32[8,16], index: 0, kind: input, shape index: {}]
  %s1 = inlined_call_operand.vmem [shape: f32[16,32], index: 1, kind: input, shape index: {}]
  %s2 = inlined_call_operand.vmem [shape: f32[1,32], index: 2, kind: input, shape index: {}]
  %s3 = inlined_call_operand.vmem [shape: f32[32,8], index: 3, kind: input, shape index: {}]
  %s4 = inlined_call_operand.vmem [shape: f32[1,8], index: 4, kind: input, shape index: {}]
  %s5 = inlined_call_operand.hbm [shape: f32[8,8], index: 5, kind: output, shape index: {}]
  %s6 = sld [smem:[#allocation0]]
  $region30: #{tpu_custom_call.1} parent=0
    _
  %s8 = ssub.s32 1, %s6
  %s9 = scalar_select 0, %s8, %s6
  $region1: #{tpu_custom_call.1} parent=0
    #allocation2 [shape = 'u8[4096]{0}', space=vmem, size = 0x1000, scoped, tag = 'output window, operand 0, single buffered']
    #allocation3 [shape = 's32[1]{0}', space=sflag, size = 0x4, scoped, tag = 'scoped memory for tpu_custom_call.1']
    %10 = vsyncpa [#allocation3], 0
    // Predicated region
    $region2: #{tpu_custom_call.1} parent=1 // pred_check
      _
    $region3: #{tpu_custom_call.1} parent=1 // pred_check_branch
      %12 = sbr.rel (0) target = $region5
    $region4: #{tpu_custom_call.1} parent=1 // pred_region
      _
    $region5: #{tpu_custom_call.1} parent=1 // pred_fallthru
      _
    // Predicated region
    $region6: #{tpu_custom_call.1} parent=1 // pred_check
      _
    $region7: #{tpu_custom_call.1} parent=1 // pred_check_branch
      %14 = sbr.rel (0) target = $region9
    $region8: #{tpu_custom_call.1} parent=1 // pred_region
      _
    $region9: #{tpu_custom_call.1} parent=1 // pred_fallthru
      _
    // Predicated region
    $region10: #{tpu_custom_call.1} parent=1 // pred_check
      _
    $region11: #{tpu_custom_call.1} parent=1 // pred_check_branch
      %16 = sbr.rel (0) target = $region13
    $region12: #{tpu_custom_call.1} parent=1 // pred_region
      _
    $region13: #{tpu_custom_call.1} parent=1 // pred_fallthru
      _
    // Predicated region
    $region14: #{tpu_custom_call.1} parent=1 // pred_check
      _
    $region15: #{tpu_custom_call.1} parent=1 // pred_check_branch
      %18 = sbr.rel (0) target = $region17
    $region16: #{tpu_custom_call.1} parent=1 // pred_region
      _
    $region17: #{tpu_custom_call.1} parent=1 // pred_fallthru
      _
    // Predicated region
    $region18: #{tpu_custom_call.1} parent=1 // pred_check
      _
    $region19: #{tpu_custom_call.1} parent=1 // pred_check_branch
      %20 = sbr.rel (0) target = $region21
    $region20: #{tpu_custom_call.1} parent=1 // pred_region
      _
    $region21: #{tpu_custom_call.1} parent=1 // pred_fallthru
      _
    %v21 = vld [vmem:[%s0] sm:$0xff]
    %v22 = vld [vmem:[%s1] sm:$0xff]
    %v23 = vld [vmem:[%s1 + $0x8] sm:$0xff]
    %v24 = vld [vmem:[%s2] sm:$0x1]
    %v26 = vlaneseq
    %v27 = vshrl.u32 %v26, 7
    %v28 = vsub.s32 0, %v27
    %v29 = vrot.slane %v24, %v28
    %vm31 = vcmask 130048
    %v33 = vsel %vm31, %v21, 0
    %35 = vmatprep.subr.mxu0 0.0
    %36 = vmatpush1.msra.mxu0 %v22
    %37 = vmatprep.subr.mxu0 0.0
    %38 = vmatpush1.msra.mxu0 %v23
    %39 = vmatprep.subr.mxu0 0.0
    %40 = vmatpush1.msra.mxu0 0.0
    %41 = vmatprep.subr.mxu0 0.0
    %42 = vmatpush1.msra.mxu0 0.0
    %43 = vmatprep.subr.mxu0 0.0
    %44 = vmatpush1.msra.mxu0 0.0
    %45 = vmatprep.subr.mxu0 0.0
    %46 = vmatpush1.msra.mxu0 0.0
    %47 = vmatprep.subr.mxu0 0.0
    %48 = vmatpush1.msra.mxu0 0.0
    %49 = vmatprep.subr.mxu0 0.0
    %50 = vmatpush1.msra.mxu0 0.0
    %51 = vmatprep.subr.mxu0 0.0
    %52 = vmatpush1.msra.mxu0 0.0
    %53 = vmatprep.subr.mxu0 0.0
    %54 = vmatpush1.msra.mxu0 0.0
    %55 = vmatprep.subr.mxu0 0.0
    %56 = vmatpush1.msra.mxu0 0.0
    %57 = vmatprep.subr.mxu0 0.0
    %58 = vmatpush1.msra.mxu0 0.0
    %59 = vmatprep.subr.mxu0 0.0
    %60 = vmatpush1.msra.mxu0 0.0
    %61 = vmatprep.subr.mxu0 0.0
    %62 = vmatpush1.msra.mxu0 0.0
    %63 = vmatprep.subr.mxu0 0.0
    %64 = vmatpush1.msra.mxu0 0.0
    %65 = vmatprep.subr.mxu0 0.0
    %66 = vmatpush1.msra.mxu0 0.0
    %67 = vmatprep.subr.mxu0 0.0
    %68 = vmatpush1.msra.mxu0 0.0
    %69 = vmatprep.subr.mxu0 0.0
    %70 = vmatpush1.msra.mxu0 0.0
    %71 = vmatprep.subr.mxu0 0.0
    %72 = vmatpush1.msra.mxu0 0.0
    %73 = vmatprep.subr.mxu0 0.0
    %74 = vmatpush1.msra.mxu0 0.0
    %75 = vmatprep.subr.mxu0 0.0
    %76 = vmatpush1.msra.mxu0 0.0
    %77 = vmatprep.subr.mxu0 0.0
    %78 = vmatpush1.msra.mxu0 0.0
    %79 = vmatprep.subr.mxu0 0.0
    %80 = vmatpush1.msra.mxu0 0.0
    %81 = vmatprep.subr.mxu0 0.0
    %82 = vmatpush1.msra.mxu0 0.0
    %83 = vmatprep.subr.mxu0 0.0
    %84 = vmatpush1.msra.mxu0 0.0
    %85 = vmatprep.subr.mxu0 0.0
    %86 = vmatpush1.msra.mxu0 0.0
    %87 = vmatprep.subr.mxu0 0.0
    %88 = vmatpush1.msra.mxu0 0.0
    %89 = vmatprep.subr.mxu0 0.0
    %90 = vmatpush1.msra.mxu0 0.0
    %91 = vmatprep.subr.mxu0 0.0
    %92 = vmatpush1.msra.mxu0 0.0
    %93 = vmatprep.subr.mxu0 0.0
    %94 = vmatpush1.msra.mxu0 0.0
    %95 = vmatprep.subr.mxu0 0.0
    %96 = vmatpush1.msra.mxu0 0.0
    %97 = vmatprep.subr.mxu0 0.0
    %98 = vmatpush1.msra.mxu0 0.0
    %99 = vmatprep.mubr.f32.mxu0 0.0
    %100 = vmatmul.mubr.f32.gmra.mrb[0].mxu0 %v33
    %v101 = vpop.f32.mrb[0].mxu0
    %v102 = vadd.f32 %v29, %v101
    %v103 = vpop.f32.mrb[0].mxu0
    %104 = vdwg.mxu0
    %v105 = vmax.f32 %v102, 0.0
    %v106 = vld [vmem:[%s3] sm:$0xff]
    %v107 = vld [vmem:[%s3 + $0x8] sm:$0xff]
    %v108 = vld [vmem:[%s3 + $0x10] sm:$0xff]
    %v109 = vld [vmem:[%s3 + $0x18] sm:$0xff]
    %v110 = vld [vmem:[%s4] sm:$0x1]
    %v112 = vlaneseq
    %v113 = vshrl.u32 %v112, 7
    %v114 = vsub.s32 0, %v113
    %v115 = vrot.slane %v110, %v114
    %vm117 = vcmask 261120
    %v119 = vsel %vm117, %v105, 0
    %121 = vmatprep.subr.mxu0 0.0
    %122 = vmatpush1.msra.mxu0 %v106
    %123 = vmatprep.subr.mxu0 0.0
    %124 = vmatpush1.msra.mxu0 %v107
    %125 = vmatprep.subr.mxu0 0.0
    %126 = vmatpush1.msra.mxu0 %v108
    %127 = vmatprep.subr.mxu0 0.0
    %128 = vmatpush1.msra.mxu0 %v109
    %129 = vmatprep.subr.mxu0 0.0
    %130 = vmatpush1.msra.mxu0 0.0
    %131 = vmatprep.subr.mxu0 0.0
    %132 = vmatpush1.msra.mxu0 0.0
    %133 = vmatprep.subr.mxu0 0.0
    %134 = vmatpush1.msra.mxu0 0.0
    %135 = vmatprep.subr.mxu0 0.0
    %136 = vmatpush1.msra.mxu0 0.0
    %137 = vmatprep.subr.mxu0 0.0
    %138 = vmatpush1.msra.mxu0 0.0
    %139 = vmatprep.subr.mxu0 0.0
    %140 = vmatpush1.msra.mxu0 0.0
    %141 = vmatprep.subr.mxu0 0.0
    %142 = vmatpush1.msra.mxu0 0.0
    %143 = vmatprep.subr.mxu0 0.0
    %144 = vmatpush1.msra.mxu0 0.0
    %145 = vmatprep.subr.mxu0 0.0
    %146 = vmatpush1.msra.mxu0 0.0
    %147 = vmatprep.subr.mxu0 0.0
    %148 = vmatpush1.msra.mxu0 0.0
    %149 = vmatprep.subr.mxu0 0.0
    %150 = vmatpush1.msra.mxu0 0.0
    %151 = vmatprep.subr.mxu0 0.0
    %152 = vmatpush1.msra.mxu0 0.0
    %153 = vmatprep.subr.mxu0 0.0
    %154 = vmatpush1.msra.mxu0 0.0
    %155 = vmatprep.subr.mxu0 0.0
    %156 = vmatpush1.msra.mxu0 0.0
    %157 = vmatprep.subr.mxu0 0.0
    %158 = vmatpush1.msra.mxu0 0.0
    %159 = vmatprep.subr.mxu0 0.0
    %160 = vmatpush1.msra.mxu0 0.0
    %161 = vmatprep.subr.mxu0 0.0
    %162 = vmatpush1.msra.mxu0 0.0
    %163 = vmatprep.subr.mxu0 0.0
    %164 = vmatpush1.msra.mxu0 0.0
    %165 = vmatprep.subr.mxu0 0.0
    %166 = vmatpush1.msra.mxu0 0.0
    %167 = vmatprep.subr.mxu0 0.0
    %168 = vmatpush1.msra.mxu0 0.0
    %169 = vmatprep.subr.mxu0 0.0
    %170 = vmatpush1.msra.mxu0 0.0
    %171 = vmatprep.subr.mxu0 0.0
    %172 = vmatpush1.msra.mxu0 0.0
    %173 = vmatprep.subr.mxu0 0.0
    %174 = vmatpush1.msra.mxu0 0.0
    %175 = vmatprep.subr.mxu0 0.0
    %176 = vmatpush1.msra.mxu0 0.0
    %177 = vmatprep.subr.mxu0 0.0
    %178 = vmatpush1.msra.mxu0 0.0
    %179 = vmatprep.subr.mxu0 0.0
    %180 = vmatpush1.msra.mxu0 0.0
    %181 = vmatprep.subr.mxu0 0.0
    %182 = vmatpush1.msra.mxu0 0.0
    %183 = vmatprep.subr.mxu0 0.0
    %184 = vmatpush1.msra.mxu0 0.0
    %185 = vmatprep.mubr.f32.mxu0 0.0
    %186 = vmatmul.mubr.f32.gmra.mrb[0].mxu0 %v119
    %v187 = vpop.f32.mrb[0].mxu0
    %v188 = vadd.f32 %v115, %v187
    %v189 = vpop.f32.mrb[0].mxu0
    %190 = vdwg.mxu0
    %vm191 = vcmask 64512
    %192 = vst.msk [vmem:[#allocation2] sm:$0xff] %vm191, %v188
    // Predicated region
    $region22: #{tpu_custom_call.1} parent=1 // pred_check
      _
    $region23: #{tpu_custom_call.1} parent=1 // pred_check_branch
      %194 = sbr.rel (0) target = $region25
    $region24: #{tpu_custom_call.1} parent=1 // pred_region
      %s196 = ssub.s32 128, 128
      %197 = vsyncadd [#allocation3], %s196
      %s199 = sshll.u32 [#allocation2], 4
      %s200 = int_to_ptr.vmem [resolvable:$true] %s199
      %202 = dma.vmem_to_hbm [thread:$0]  %s200, 128, %s5, [#allocation3]
    $region25: #{tpu_custom_call.1} parent=1 // pred_fallthru
      _
    // Predicated region
    $region26: #{tpu_custom_call.1} parent=1 // pred_check
      _
    $region27: #{tpu_custom_call.1} parent=1 // pred_check_branch
      %204 = sbr.rel (0) target = $region29
    $region28: #{tpu_custom_call.1} parent=1 // pred_region
      %205 = dma.done [#allocation3], 128
    $region29: #{tpu_custom_call.1} parent=1 // pred_fallthru
      _
    %206 = vsyncpa [#allocation3], 1

</llo_original>
